<compile_context>
chip_gen: v6e
topology: v6e:2x2x1
jax: 0.10.0
libtpu: 0.0.40
codegen_flags: <defaults>
</compile_context>

<pallas_src>
import functools

import jax
import jax.numpy as jnp
import numpy as np
from jax.experimental import pallas as pl
from jax.experimental.pallas import tpu as pltpu


def _round_up(x, m):
    return (x + m - 1) // m * m


def pregate_kernel(q_ref, k_ref, w_ref, b_ref, out_ref, *, use_tanh):
    # q_ref, k_ref : (Dp, TN) tiles  -- token axis on lanes, feature axis on sublanes
    # w_ref        : (Dp, 2) resident weights (col 0 = w_q, col 1 = w_k)
    # b_ref        : (2,) biases in SMEM
    # out_ref      : (2, TN) lane-dense gates (row 0 = p_q, row 1 = p_k)
    q = q_ref[...]
    k = k_ref[...]
    wq = w_ref[:, 0:1]                                        # (Dp, 1)
    wk = w_ref[:, 1:2]                                        # (Dp, 1)

    # Reduction over the feature axis = VALU adds down the sublane axis.
    zq = jnp.sum(q * wq, axis=0, keepdims=True) + b_ref[0]    # (1, TN)
    zk = jnp.sum(k * wk, axis=0, keepdims=True) + b_ref[1]    # (1, TN)

    if use_tanh:
        pq = (jnp.tanh(zq) + 1.0) * 0.5
        pk = (jnp.tanh(zk) + 1.0) * 0.5
    else:
        pq = jax.nn.sigmoid(zq)
        pk = jax.nn.sigmoid(zk)

    out_ref[0:1, :] = pq
    out_ref[1:2, :] = pk


def pregate_forward(Q, K, w_q, b_q, w_k, b_k, *, use_tanh=False, tile_n=512):
    """Pallas PreGate forward.

    Q, K       : (B, S, D) float32
    w_q, w_k   : (D,) float32   (nn.Linear(dim, 1).weight, squeezed)
    b_q, b_k   : scalar float32 (nn.Linear(dim, 1).bias)
    returns (p_q, p_k), each (B, S, 1), matching the PyTorch module.
    """
    B, S, D = Q.shape
    assert K.shape == (B, S, D)
    N = B * S
    Dp = _round_up(D, 128)                 # feature axis -> sublanes, padded
    Np = _round_up(max(N, 1), tile_n)      # token axis   -> lanes, padded
    n_blocks = Np // tile_n
    f32 = jnp.float32

    # Lane-dense slabs: tokens on lanes, features on sublanes.
    qT = jnp.zeros((Dp, Np), f32).at[:D, :N].set(Q.reshape(N, D).T.astype(f32))
    kT = jnp.zeros((Dp, Np), f32).at[:D, :N].set(K.reshape(N, D).T.astype(f32))
    w = (jnp.zeros((Dp, 2), f32)
         .at[:D, 0].set(w_q.astype(f32))
         .at[:D, 1].set(w_k.astype(f32)))
    b = jnp.stack([jnp.asarray(b_q, f32), jnp.asarray(b_k, f32)])

    grid_spec = pltpu.PrefetchScalarGridSpec(
        num_scalar_prefetch=0,
        grid=(n_blocks,),
        in_specs=[
            pl.BlockSpec((Dp, tile_n), lambda i: (0, i)),        # Q tile (pipelined)
            pl.BlockSpec((Dp, tile_n), lambda i: (0, i)),        # K tile (pipelined)
            pl.BlockSpec((Dp, 2), lambda i: (0, 0)),             # weights (VMEM-resident)
            pl.BlockSpec(memory_space=pltpu.MemorySpace.SMEM),   # scalar biases
        ],
        out_specs=pl.BlockSpec((2, tile_n), lambda i: (0, i)),   # lane-dense gates
    )

    out = pl.pallas_call(
        functools.partial(pregate_kernel, use_tanh=use_tanh),
        out_shape=jax.ShapeDtypeStruct((2, Np), f32),
        grid_spec=grid_spec,
        compiler_params=pltpu.CompilerParams(
            dimension_semantics=("parallel",),   # both TCs on v7x split the token tiles
            vmem_limit_bytes=32 * 1024 * 1024,   # v7x-safe scoped VMEM
        ),
    )(qT, kT, w, b)

    p_q = out[0, :N].reshape(B, S, 1)
    p_k = out[1, :N].reshape(B, S, 1)
    return p_q, p_k


# ---------------- pure-JAX reference (mirrors the PyTorch forward) -------------
def pregate_reference(Q, K, w_q, b_q, w_k, b_k, *, use_tanh=False):
    zq = jnp.einsum('bsd,d->bs', Q, w_q)[..., None] + b_q
    zk = jnp.einsum('bsd,d->bs', K, w_k)[..., None] + b_k
    if use_tanh:
        return (jnp.tanh(zq) + 1.0) * 0.5, (jnp.tanh(zk) + 1.0) * 0.5
    return jax.nn.sigmoid(zq), jax.nn.sigmoid(zk)


if __name__ == "__main__":
    # Small shapes consistent with the module usage: batch=2, seq=8, dim=32.
    B, S, D = 2, 8, 32
    key = jax.random.PRNGKey(0)
    kq, kk, kwq, kwk, kbq, kbk = jax.random.split(key, 6)

    Q = jax.random.normal(kq, (B, S, D), jnp.float32)
    K = jax.random.normal(kk, (B, S, D), jnp.float32)
    w_q = 0.1 * jax.random.normal(kwq, (D,), jnp.float32)
    w_k = 0.1 * jax.random.normal(kwk, (D,), jnp.float32)
    b_q = 0.1 * jax.random.normal(kbq, (), jnp.float32)
    b_k = 0.1 * jax.random.normal(kbk, (), jnp.float32)

    for use_tanh in (False, True):   # exercise both gate variants of the module
        p_q, p_k = pregate_forward(Q, K, w_q, b_q, w_k, b_k, use_tanh=use_tanh)
        p_q = jax.block_until_ready(p_q)
        p_k = jax.block_until_ready(p_k)

        p_q_ref, p_k_ref = pregate_reference(Q, K, w_q, b_q, w_k, b_k,
                                             use_tanh=use_tanh)
        np.testing.assert_allclose(np.asarray(p_q), np.asarray(p_q_ref),
                                   rtol=1e-5, atol=1e-5)
        np.testing.assert_allclose(np.asarray(p_k), np.asarray(p_k_ref),
                                   rtol=1e-5, atol=1e-5)

    print("KERNEL_OK")
</pallas_src>

<mosaic_0001>
module attributes {stable_mosaic.version = 11 : i64} {
  func.func @pregate_kernel(%arg0: i32, %arg1: memref<128x512xf32, #tpu.memory_space<vmem>>, %arg2: memref<128x512xf32, #tpu.memory_space<vmem>>, %arg3: memref<128x2xf32, #tpu.memory_space<vmem>>, %arg4: memref<2xf32, #tpu.memory_space<smem>>, %arg5: memref<2x512xf32, #tpu.memory_space<vmem>>) attributes {dimension_semantics = [#tpu.dimension_semantics<parallel>], iteration_bounds = array<i64: 1>, scalar_prefetch = 0 : i64, scratch_operands = 0 : i64, tpu.core_type = #tpu.core_type<tc>, window_params = [{transform_indices = @transform_0, window_bounds = array<i64: 128, 512>}, {transform_indices = @transform_1, window_bounds = array<i64: 128, 512>}, {pipeline_mode = #tpu.pipeline_mode<synchronous>, transform_indices = @transform_2, window_bounds = array<i64: 128, 2>}, {transform_indices = @transform_3, window_bounds = array<i64: 2>}, {transform_indices = @transform_4, window_bounds = array<i64: 2, 512>}]} {
    %c0 = arith.constant 0 : index
    %c0_0 = arith.constant 0 : index
    %0 = vector.load %arg1[%c0, %c0_0] : memref<128x512xf32, #tpu.memory_space<vmem>>, vector<128x512xf32>
    %c0_1 = arith.constant 0 : index
    %c0_2 = arith.constant 0 : index
    %1 = vector.load %arg2[%c0_1, %c0_2] : memref<128x512xf32, #tpu.memory_space<vmem>>, vector<128x512xf32>
    %c0_3 = arith.constant 0 : index
    %c0_4 = arith.constant 0 : index
    %2 = vector.load %arg3[%c0_3, %c0_4] : memref<128x2xf32, #tpu.memory_space<vmem>>, vector<128x1xf32>
    %c0_5 = arith.constant 0 : index
    %c1 = arith.constant 1 : index
    %3 = vector.load %arg3[%c0_5, %c1] : memref<128x2xf32, #tpu.memory_space<vmem>>, vector<128x1xf32>
    %4 = vector.broadcast %2 : vector<128x1xf32> to vector<128x512xf32>
    %5 = arith.mulf %0, %4 : vector<128x512xf32>
    %cst = arith.constant dense<0.000000e+00> : vector<512xf32>
    %6 = vector.multi_reduction <add>, %5, %cst [0] : vector<128x512xf32> to vector<512xf32>
    %7 = vector.shape_cast %6 : vector<512xf32> to vector<1x512xf32>
    %c0_6 = arith.constant 0 : index
    %8 = memref.load %arg4[%c0_6] : memref<2xf32, #tpu.memory_space<smem>>
    %9 = vector.broadcast %8 : f32 to vector<1x512xf32>
    %10 = arith.addf %7, %9 : vector<1x512xf32>
    %11 = vector.broadcast %3 : vector<128x1xf32> to vector<128x512xf32>
    %12 = arith.mulf %1, %11 : vector<128x512xf32>
    %cst_7 = arith.constant dense<0.000000e+00> : vector<512xf32>
    %13 = vector.multi_reduction <add>, %12, %cst_7 [0] : vector<128x512xf32> to vector<512xf32>
    %14 = vector.shape_cast %13 : vector<512xf32> to vector<1x512xf32>
    %c1_8 = arith.constant 1 : index
    %15 = memref.load %arg4[%c1_8] : memref<2xf32, #tpu.memory_space<smem>>
    %16 = vector.broadcast %15 : f32 to vector<1x512xf32>
    %17 = arith.addf %14, %16 : vector<1x512xf32>
    %18 = arith.negf %10 : vector<1x512xf32>
    %19 = math.exp %18 : vector<1x512xf32>
    %cst_9 = arith.constant 1.000000e+00 : f32
    %20 = vector.broadcast %cst_9 : f32 to vector<1x512xf32>
    %21 = arith.addf %20, %19 : vector<1x512xf32>
    %22 = arith.divf %20, %21 : vector<1x512xf32>
    %23 = arith.negf %17 : vector<1x512xf32>
    %24 = math.exp %23 : vector<1x512xf32>
    %cst_10 = arith.constant 1.000000e+00 : f32
    %25 = vector.broadcast %cst_10 : f32 to vector<1x512xf32>
    %26 = arith.addf %25, %24 : vector<1x512xf32>
    %27 = arith.divf %25, %26 : vector<1x512xf32>
    %c0_11 = arith.constant 0 : index
    %c0_12 = arith.constant 0 : index
    %28 = vector.load %arg5[%c0_11, %c0_12] : memref<2x512xf32, #tpu.memory_space<vmem>>, vector<1x512xf32>
    tpu.vector_store %arg5[%c0_11, %c0_12], %22 {strides = array<i32>} : memref<2x512xf32, #tpu.memory_space<vmem>>, vector<1x512xf32>,
    %c1_13 = arith.constant 1 : index
    %c0_14 = arith.constant 0 : index
    %29 = vector.load %arg5[%c1_13, %c0_14] : memref<2x512xf32, #tpu.memory_space<vmem>>, vector<1x512xf32>
    tpu.vector_store %arg5[%c1_13, %c0_14], %27 {strides = array<i32>} : memref<2x512xf32, #tpu.memory_space<vmem>>, vector<1x512xf32>,
    return
  }
  func.func @transform_0(%arg0: i32) -> (i32, i32) {
    %c0_i32 = arith.constant 0 : i32
    %c0_i32_0 = arith.constant 0 : i32
    return %c0_i32, %arg0 : i32, i32
  }
  func.func @transform_1(%arg0: i32) -> (i32, i32) {
    %c0_i32 = arith.constant 0 : i32
    %c0_i32_0 = arith.constant 0 : i32
    return %c0_i32, %arg0 : i32, i32
  }
  func.func @transform_2(%arg0: i32) -> (i32, i32) {
    %c0_i32 = arith.constant 0 : i32
    %c0_i32_0 = arith.constant 0 : i32
    %c0_i32_1 = arith.constant 0 : i32
    return %c0_i32, %c0_i32_0 : i32, i32
  }
  func.func @transform_3(%arg0: i32) -> i32 {
    %c0_i32 = arith.constant 0 : i32
    %c0_i32_0 = arith.constant 0 : i32
    return %c0_i32 : i32
  }
  func.func @transform_4(%arg0: i32) -> (i32, i32) {
    %c0_i32 = arith.constant 0 : i32
    %c0_i32_0 = arith.constant 0 : i32
    return %c0_i32, %arg0 : i32, i32
  }
}

</mosaic_0001>

<llo_original>
// kernel: tpu_custom_call.1
$region0: #{tpu_custom_call.1}
  #allocation0 [shape = 'u32[]', space=smem, size = 0x4, offset = 0x4, fixed_abs, tag = 'smem constant byte address 0x4 - core index']
  #allocation1 [shape = 'u32[144,128]{1,0:T(1,128)}', space=vmem, size = 0x12000, scoped, tag = 'internal scratch']
  %s0 = inlined_call_operand.hbm [shape: f32[128,512], index: 0, kind: input, shape index: {}]
  %s1 = inlined_call_operand.hbm [shape: f32[128,512], index: 1, kind: input, shape index: {}]
  %s2 = inlined_call_operand.vmem [shape: f32[128,2], index: 2, kind: input, shape index: {}]
  %s3 = inlined_call_operand.vmem [shape: f32[2], index: 3, kind: input, shape index: {}]
  %s4 = inlined_call_operand.hbm [shape: f32[2,512], index: 4, kind: output, shape index: {}]
  %s5 = sld [smem:[#allocation0]]
  $region38: #{tpu_custom_call.1} parent=0
    _
  %s7 = ssub.s32 1, %s5
  %s8 = scalar_select 0, %s7, %s5
  $region1: #{tpu_custom_call.1} parent=0
    #allocation2 [shape = 'u8[262144]{0}', space=vmem, size = 0x40000, scoped, tag = 'input window, operand 0, single buffered']
    #allocation3 [shape = 's32[1]{0}', space=sflag, size = 0x4, scoped, tag = 'scoped memory for tpu_custom_call.1']
    #allocation4 [shape = 's32[1]{0}', space=sflag, size = 0x4, scoped, tag = 'scoped memory for tpu_custom_call.1']
    #allocation5 [shape = 's32[1]{0}', space=sflag, size = 0x4, scoped, tag = 'scoped memory for tpu_custom_call.1']
    #allocation6 [shape = 'u8[262144]{0}', space=vmem, size = 0x40000, scoped, tag = 'input window, operand 1, single buffered']
    #allocation7 [shape = 's32[1]{0}', space=sflag, size = 0x4, scoped, tag = 'scoped memory for tpu_custom_call.1']
    #allocation8 [shape = 'u8[512]{0}', space=smem, size = 0x200, scoped, tag = 'input window, operand 3, single buffered']
    #allocation9 [shape = 'u8[4096]{0}', space=vmem, size = 0x1000, scoped, tag = 'output window, operand 0, single buffered']
    %9 = vsyncpa [#allocation3], 0
    %10 = vsyncpa [#allocation7], 0
    %11 = vsyncpa [#allocation5], 0
    %12 = vsyncpa [#allocation4], 0
    // Predicated region
    $region2: #{tpu_custom_call.1} parent=1 // pred_check
      _
    $region3: #{tpu_custom_call.1} parent=1 // pred_check_branch
      %14 = sbr.rel (0) target = $region5
    $region4: #{tpu_custom_call.1} parent=1 // pred_region
      %s16 = ssub.s32 8192, 8192
      %17 = vsyncadd [#allocation3], %s16
      %s18 = sshll.u32 [#allocation2], 4
      %s19 = int_to_ptr.vmem [resolvable:$true] %s18
      %24 = dma.hbm_to_vmem [thread:$0]  %s0, 8192, %s19, [#allocation3], 512, 512, 32
    $region5: #{tpu_custom_call.1} parent=1 // pred_fallthru
      _
    // Predicated region
    $region6: #{tpu_custom_call.1} parent=1 // pred_check
      _
    $region7: #{tpu_custom_call.1} parent=1 // pred_check_branch
      %26 = sbr.rel (0) target = $region9
    $region8: #{tpu_custom_call.1} parent=1 // pred_region
      %s28 = ssub.s32 8192, 8192
      %29 = vsyncadd [#allocation7], %s28
      %s30 = sshll.u32 [#allocation6], 4
      %s31 = int_to_ptr.vmem [resolvable:$true] %s30
      %36 = dma.hbm_to_vmem [thread:$0]  %s1, 8192, %s31, [#allocation7], 512, 512, 32
    $region9: #{tpu_custom_call.1} parent=1 // pred_fallthru
      _
    // Predicated region
    $region10: #{tpu_custom_call.1} parent=1 // pred_check
      _
    $region11: #{tpu_custom_call.1} parent=1 // pred_check_branch
      %38 = sbr.rel (0) target = $region13
    $region12: #{tpu_custom_call.1} parent=1 // pred_region
      _
    $region13: #{tpu_custom_call.1} parent=1 // pred_fallthru
      _
    // Predicated region
    $region14: #{tpu_custom_call.1} parent=1 // pred_check
      _
    $region15: #{tpu_custom_call.1} parent=1 // pred_check_branch
      %40 = sbr.rel (0) target = $region17
    $region16: #{tpu_custom_call.1} parent=1 // pred_region
      %s42 = ssub.s32 16, 16
      %43 = vsyncadd [#allocation5], %s42
      %s45 = sshll.u32 %s3, 4
      %s46 = int_to_ptr.vmem [resolvable:$true] %s45
      %48 = dma.vmem_to_smem %s46, 16, [#allocation8], [#allocation5]
    $region17: #{tpu_custom_call.1} parent=1 // pred_fallthru
      _
    // Predicated region
    $region18: #{tpu_custom_call.1} parent=1 // pred_check
      _
    $region19: #{tpu_custom_call.1} parent=1 // pred_check_branch
      %50 = sbr.rel (0) target = $region21
    $region20: #{tpu_custom_call.1} parent=1 // pred_region
      %51 = dma.done [#allocation3], 8192
    $region21: #{tpu_custom_call.1} parent=1 // pred_fallthru
      _
    // Predicated region
    $region22: #{tpu_custom_call.1} parent=1 // pred_check
      _
    $region23: #{tpu_custom_call.1} parent=1 // pred_check_branch
      %53 = sbr.rel (0) target = $region25
    $region24: #{tpu_custom_call.1} parent=1 // pred_region
      %54 = dma.done [#allocation7], 8192
    $region25: #{tpu_custom_call.1} parent=1 // pred_fallthru
      _
    // Predicated region
    $region26: #{tpu_custom_call.1} parent=1 // pred_check
      _
    $region27: #{tpu_custom_call.1} parent=1 // pred_check_branch
      %56 = sbr.rel (0) target = $region29
    $region28: #{tpu_custom_call.1} parent=1 // pred_region
      %57 = dma.done [#allocation5], 16
    $region29: #{tpu_custom_call.1} parent=1 // pred_fallthru
      _
    %58 = sfence
    %v59 = vld [vmem:[#allocation2] sm:$0xff]
    %v60 = vld [vmem:[#allocation2 + $0x8] sm:$0xff]
    %v61 = vld [vmem:[#allocation2 + $0x10] sm:$0xff]
    %v62 = vld [vmem:[#allocation2 + $0x18] sm:$0xff]
    %v63 = vld [vmem:[#allocation2 + $0x20] sm:$0xff]
    %v64 = vld [vmem:[#allocation2 + $0x28] sm:$0xff]
    %v65 = vld [vmem:[#allocation2 + $0x30] sm:$0xff]
    %v66 = vld [vmem:[#allocation2 + $0x38] sm:$0xff]
    %v67 = vld [vmem:[#allocation2 + $0x40] sm:$0xff]
    %v68 = vld [vmem:[#allocation2 + $0x48] sm:$0xff]
    %v69 = vld [vmem:[#allocation2 + $0x50] sm:$0xff]
    %v70 = vld [vmem:[#allocation2 + $0x58] sm:$0xff]
    %v71 = vld [vmem:[#allocation2 + $0x60] sm:$0xff]
    %v72 = vld [vmem:[#allocation2 + $0x68] sm:$0xff]
    %v73 = vld [vmem:[#allocation2 + $0x70] sm:$0xff]
    %v74 = vld [vmem:[#allocation2 + $0x78] sm:$0xff]
    %v75 = vld [vmem:[#allocation2 + $0x80] sm:$0xff]
    %v76 = vld [vmem:[#allocation2 + $0x88] sm:$0xff]
    %v77 = vld [vmem:[#allocation2 + $0x90] sm:$0xff]
    %v78 = vld [vmem:[#allocation2 + $0x98] sm:$0xff]
    %v79 = vld [vmem:[#allocation2 + $0xa0] sm:$0xff]
    %v80 = vld [vmem:[#allocation2 + $0xa8] sm:$0xff]
    %v81 = vld [vmem:[#allocation2 + $0xb0] sm:$0xff]
    %v82 = vld [vmem:[#allocation2 + $0xb8] sm:$0xff]
    %v83 = vld [vmem:[#allocation2 + $0xc0] sm:$0xff]
    %v84 = vld [vmem:[#allocation2 + $0xc8] sm:$0xff]
    %v85 = vld [vmem:[#allocation2 + $0xd0] sm:$0xff]
    %v86 = vld [vmem:[#allocation2 + $0xd8] sm:$0xff]
    %v87 = vld [vmem:[#allocation2 + $0xe0] sm:$0xff]
    %v88 = vld [vmem:[#allocation2 + $0xe8] sm:$0xff]
    %v89 = vld [vmem:[#allocation2 + $0xf0] sm:$0xff]
    %v90 = vld [vmem:[#allocation2 + $0xf8] sm:$0xff]
    %v91 = vld [vmem:[#allocation2 + $0x100] sm:$0xff]
    %v92 = vld [vmem:[#allocation2 + $0x108] sm:$0xff]
    %v93 = vld [vmem:[#allocation2 + $0x110] sm:$0xff]
    %v94 = vld [vmem:[#allocation2 + $0x118] sm:$0xff]
    %v95 = vld [vmem:[#allocation2 + $0x120] sm:$0xff]
    %v96 = vld [vmem:[#allocation2 + $0x128] sm:$0xff]
    %v97 = vld [vmem:[#allocation2 + $0x130] sm:$0xff]
    %v98 = vld [vmem:[#allocation2 + $0x138] sm:$0xff]
    %v99 = vld [vmem:[#allocation2 + $0x140] sm:$0xff]
    %v100 = vld [vmem:[#allocation2 + $0x148] sm:$0xff]
    %v101 = vld [vmem:[#allocation2 + $0x150] sm:$0xff]
    %v102 = vld [vmem:[#allocation2 + $0x158] sm:$0xff]
    %v103 = vld [vmem:[#allocation2 + $0x160] sm:$0xff]
    %v104 = vld [vmem:[#allocation2 + $0x168] sm:$0xff]
    %v105 = vld [vmem:[#allocation2 + $0x170] sm:$0xff]
    %v106 = vld [vmem:[#allocation2 + $0x178] sm:$0xff]
    %v107 = vld [vmem:[#allocation2 + $0x180] sm:$0xff]
    %v108 = vld [vmem:[#allocation2 + $0x188] sm:$0xff]
    %v109 = vld [vmem:[#allocation2 + $0x190] sm:$0xff]
    %v110 = vld [vmem:[#allocation2 + $0x198] sm:$0xff]
    %v111 = vld [vmem:[#allocation2 + $0x1a0] sm:$0xff]
    %v112 = vld [vmem:[#allocation2 + $0x1a8] sm:$0xff]
    %v113 = vld [vmem:[#allocation2 + $0x1b0] sm:$0xff]
    %v114 = vld [vmem:[#allocation2 + $0x1b8] sm:$0xff]
    %v115 = vld [vmem:[#allocation2 + $0x1c0] sm:$0xff]
    %v116 = vld [vmem:[#allocation2 + $0x1c8] sm:$0xff]
    %v117 = vld [vmem:[#allocation2 + $0x1d0] sm:$0xff]
    %v118 = vld [vmem:[#allocation2 + $0x1d8] sm:$0xff]
    %v119 = vld [vmem:[#allocation2 + $0x1e0] sm:$0xff]
    %v120 = vld [vmem:[#allocation2 + $0x1e8] sm:$0xff]
    %v121 = vld [vmem:[#allocation2 + $0x1f0] sm:$0xff]
    %v122 = vld [vmem:[#allocation2 + $0x1f8] sm:$0xff]
    %v123 = vld [vmem:[#allocation6] sm:$0xff]
    %v124 = vld [vmem:[#allocation6 + $0x8] sm:$0xff]
    %v125 = vld [vmem:[#allocation6 + $0x10] sm:$0xff]
    %v126 = vld [vmem:[#allocation6 + $0x18] sm:$0xff]
    %v127 = vld [vmem:[#allocation6 + $0x20] sm:$0xff]
    %v128 = vld [vmem:[#allocation6 + $0x28] sm:$0xff]
    %v129 = vld [vmem:[#allocation6 + $0x30] sm:$0xff]
    %v130 = vld [vmem:[#allocation6 + $0x38] sm:$0xff]
    %v131 = vld [vmem:[#allocation6 + $0x40] sm:$0xff]
    %v132 = vld [vmem:[#allocation6 + $0x48] sm:$0xff]
    %v133 = vld [vmem:[#allocation6 + $0x50] sm:$0xff]
    %v134 = vld [vmem:[#allocation6 + $0x58] sm:$0xff]
    %v135 = vld [vmem:[#allocation6 + $0x60] sm:$0xff]
    %v136 = vld [vmem:[#allocation6 + $0x68] sm:$0xff]
    %v137 = vld [vmem:[#allocation6 + $0x70] sm:$0xff]
    %v138 = vld [vmem:[#allocation6 + $0x78] sm:$0xff]
    %v139 = vld [vmem:[#allocation6 + $0x80] sm:$0xff]
    %v140 = vld [vmem:[#allocation6 + $0x88] sm:$0xff]
    %v141 = vld [vmem:[#allocation6 + $0x90] sm:$0xff]
    %v142 = vld [vmem:[#allocation6 + $0x98] sm:$0xff]
    %v143 = vld [vmem:[#allocation6 + $0xa0] sm:$0xff]
    %v144 = vld [vmem:[#allocation6 + $0xa8] sm:$0xff]
    %v145 = vld [vmem:[#allocation6 + $0xb0] sm:$0xff]
    %v146 = vld [vmem:[#allocation6 + $0xb8] sm:$0xff]
    %v147 = vld [vmem:[#allocation6 + $0xc0] sm:$0xff]
    %v148 = vld [vmem:[#allocation6 + $0xc8] sm:$0xff]
    %v149 = vld [vmem:[#allocation6 + $0xd0] sm:$0xff]
    %v150 = vld [vmem:[#allocation6 + $0xd8] sm:$0xff]
    %v151 = vld [vmem:[#allocation6 + $0xe0] sm:$0xff]
    %v152 = vld [vmem:[#allocation6 + $0xe8] sm:$0xff]
    %v153 = vld [vmem:[#allocation6 + $0xf0] sm:$0xff]
    %v154 = vld [vmem:[#allocation6 + $0xf8] sm:$0xff]
    %v155 = vld [vmem:[#allocation6 + $0x100] sm:$0xff]
    %v156 = vld [vmem:[#allocation6 + $0x108] sm:$0xff]
    %v157 = vld [vmem:[#allocation6 + $0x110] sm:$0xff]
    %v158 = vld [vmem:[#allocation6 + $0x118] sm:$0xff]
    %v159 = vld [vmem:[#allocation6 + $0x120] sm:$0xff]
    %v160 = vld [vmem:[#allocation6 + $0x128] sm:$0xff]
    %v161 = vld [vmem:[#allocation6 + $0x130] sm:$0xff]
    %v162 = vld [vmem:[#allocation6 + $0x138] sm:$0xff]
    %v163 = vld [vmem:[#allocation6 + $0x140] sm:$0xff]
    %v164 = vld [vmem:[#allocation6 + $0x148] sm:$0xff]
    %v165 = vld [vmem:[#allocation6 + $0x150] sm:$0xff]
    %v166 = vld [vmem:[#allocation6 + $0x158] sm:$0xff]
    %v167 = vld [vmem:[#allocation6 + $0x160] sm:$0xff]
    %v168 = vld [vmem:[#allocation6 + $0x168] sm:$0xff]
    %v169 = vld [vmem:[#allocation6 + $0x170] sm:$0xff]
    %v170 = vld [vmem:[#allocation6 + $0x178] sm:$0xff]
    %v171 = vld [vmem:[#allocation6 + $0x180] sm:$0xff]
    %v172 = vld [vmem:[#allocation6 + $0x188] sm:$0xff]
    %v173 = vld [vmem:[#allocation6 + $0x190] sm:$0xff]
    %v174 = vld [vmem:[#allocation6 + $0x198] sm:$0xff]
    %v175 = vld [vmem:[#allocation6 + $0x1a0] sm:$0xff]
    %v176 = vld [vmem:[#allocation6 + $0x1a8] sm:$0xff]
    %v177 = vld [vmem:[#allocation6 + $0x1b0] sm:$0xff]
    %v178 = vld [vmem:[#allocation6 + $0x1b8] sm:$0xff]
    %v179 = vld [vmem:[#allocation6 + $0x1c0] sm:$0xff]
    %v180 = vld [vmem:[#allocation6 + $0x1c8] sm:$0xff]
    %v181 = vld [vmem:[#allocation6 + $0x1d0] sm:$0xff]
    %v182 = vld [vmem:[#allocation6 + $0x1d8] sm:$0xff]
    %v183 = vld [vmem:[#allocation6 + $0x1e0] sm:$0xff]
    %v184 = vld [vmem:[#allocation6 + $0x1e8] sm:$0xff]
    %v185 = vld [vmem:[#allocation6 + $0x1f0] sm:$0xff]
    %v186 = vld [vmem:[#allocation6 + $0x1f8] sm:$0xff]
    %v187 = vld [vmem:[%s2] sm:$0xff]
    %v188 = vld [vmem:[%s2 + $0x8] sm:$0xff]
    %v189 = vld [vmem:[%s2 + $0x10] sm:$0xff]
    %v190 = vld [vmem:[%s2 + $0x18] sm:$0xff]
    %v191 = vld [vmem:[%s2 + $0x20] sm:$0xff]
    %v192 = vld [vmem:[%s2 + $0x28] sm:$0xff]
    %v193 = vld [vmem:[%s2 + $0x30] sm:$0xff]
    %v194 = vld [vmem:[%s2 + $0x38] sm:$0xff]
    %v195 = vld [vmem:[%s2 + $0x40] sm:$0xff]
    %v196 = vld [vmem:[%s2 + $0x48] sm:$0xff]
    %v197 = vld [vmem:[%s2 + $0x50] sm:$0xff]
    %v198 = vld [vmem:[%s2 + $0x58] sm:$0xff]
    %v199 = vld [vmem:[%s2 + $0x60] sm:$0xff]
    %v200 = vld [vmem:[%s2 + $0x68] sm:$0xff]
    %v201 = vld [vmem:[%s2 + $0x70] sm:$0xff]
    %v202 = vld [vmem:[%s2 + $0x78] sm:$0xff]
    %204 = vset.pattern.permute.xlu0 0
    %205 = vperm.xlu0 %204, %v187
    %v206 = vpop.permute.xlu0 %205
    %209 = vset.pattern.permute.xlu0 0
    %210 = vperm.xlu0 %209, %v188
    %v211 = vpop.permute.xlu0 %210
    %214 = vset.pattern.permute.xlu0 0
    %215 = vperm.xlu0 %214, %v189
    %v216 = vpop.permute.xlu0 %215
    %219 = vset.pattern.permute.xlu0 0
    %220 = vperm.xlu0 %219, %v190
    %v221 = vpop.permute.xlu0 %220
    %224 = vset.pattern.permute.xlu0 0
    %225 = vperm.xlu0 %224, %v191
    %v226 = vpop.permute.xlu0 %225
    %229 = vset.pattern.permute.xlu0 0
    %230 = vperm.xlu0 %229, %v192
    %v231 = vpop.permute.xlu0 %230
    %234 = vset.pattern.permute.xlu0 0
    %235 = vperm.xlu0 %234, %v193
    %v236 = vpop.permute.xlu0 %235
    %239 = vset.pattern.permute.xlu0 0
    %240 = vperm.xlu0 %239, %v194
    %v241 = vpop.permute.xlu0 %240
    %244 = vset.pattern.permute.xlu0 0
    %245 = vperm.xlu0 %244, %v195
    %v246 = vpop.permute.xlu0 %245
    %249 = vset.pattern.permute.xlu0 0
    %250 = vperm.xlu0 %249, %v196
    %v251 = vpop.permute.xlu0 %250
    %254 = vset.pattern.permute.xlu0 0
    %255 = vperm.xlu0 %254, %v197
    %v256 = vpop.permute.xlu0 %255
    %259 = vset.pattern.permute.xlu0 0
    %260 = vperm.xlu0 %259, %v198
    %v261 = vpop.permute.xlu0 %260
    %264 = vset.pattern.permute.xlu0 0
    %265 = vperm.xlu0 %264, %v199
    %v266 = vpop.permute.xlu0 %265
    %269 = vset.pattern.permute.xlu0 0
    %270 = vperm.xlu0 %269, %v200
    %v271 = vpop.permute.xlu0 %270
    %274 = vset.pattern.permute.xlu0 0
    %275 = vperm.xlu0 %274, %v201
    %v276 = vpop.permute.xlu0 %275
    %279 = vset.pattern.permute.xlu0 0
    %280 = vperm.xlu0 %279, %v202
    %v281 = vpop.permute.xlu0 %280
    %v283 = vmul.f32 %v59, %v206
    %v284 = vmul.f32 %v60, %v206
    %v285 = vmul.f32 %v61, %v206
    %v286 = vmul.f32 %v62, %v206
    %v287 = vmul.f32 %v63, %v211
    %v288 = vmul.f32 %v64, %v211
    %v289 = vmul.f32 %v65, %v211
    %v290 = vmul.f32 %v66, %v211
    %v291 = vmul.f32 %v67, %v216
    %v292 = vmul.f32 %v68, %v216
    %v293 = vmul.f32 %v69, %v216
    %v294 = vmul.f32 %v70, %v216
    %v295 = vmul.f32 %v71, %v221
    %v296 = vmul.f32 %v72, %v221
    %v297 = vmul.f32 %v73, %v221
    %v298 = vmul.f32 %v74, %v221
    %v299 = vmul.f32 %v75, %v226
    %v300 = vmul.f32 %v76, %v226
    %v301 = vmul.f32 %v77, %v226
    %v302 = vmul.f32 %v78, %v226
    %v303 = vmul.f32 %v79, %v231
    %v304 = vmul.f32 %v80, %v231
    %v305 = vmul.f32 %v81, %v231
    %v306 = vmul.f32 %v82, %v231
    %v307 = vmul.f32 %v83, %v236
    %v308 = vmul.f32 %v84, %v236
    %v309 = vmul.f32 %v85, %v236
    %v310 = vmul.f32 %v86, %v236
    %v311 = vmul.f32 %v87, %v241
    %v312 = vmul.f32 %v88, %v241
    %v313 = vmul.f32 %v89, %v241
    %v314 = vmul.f32 %v90, %v241
    %v315 = vmul.f32 %v91, %v246
    %v316 = vmul.f32 %v92, %v246
    %v317 = vmul.f32 %v93, %v246
    %v318 = vmul.f32 %v94, %v246
    %v319 = vmul.f32 %v95, %v251
    %v320 = vmul.f32 %v96, %v251
    %v321 = vmul.f32 %v97, %v251
    %v322 = vmul.f32 %v98, %v251
    %v323 = vmul.f32 %v99, %v256
    %v324 = vmul.f32 %v100, %v256
    %v325 = vmul.f32 %v101, %v256
    %v326 = vmul.f32 %v102, %v256
    %v327 = vmul.f32 %v103, %v261
    %v328 = vmul.f32 %v104, %v261
    %v329 = vmul.f32 %v105, %v261
    %v330 = vmul.f32 %v106, %v261
    %v331 = vmul.f32 %v107, %v266
    %v332 = vmul.f32 %v108, %v266
    %v333 = vmul.f32 %v109, %v266
    %v334 = vmul.f32 %v110, %v266
    %v335 = vmul.f32 %v111, %v271
    %v336 = vmul.f32 %v112, %v271
    %v337 = vmul.f32 %v113, %v271
    %v338 = vmul.f32 %v114, %v271
    %v339 = vmul.f32 %v115, %v276
    %v340 = vmul.f32 %v116, %v276
    %v341 = vmul.f32 %v117, %v276
    %v342 = vmul.f32 %v118, %v276
    %v343 = vmul.f32 %v119, %v281
    %v344 = vmul.f32 %v120, %v281
    %v345 = vmul.f32 %v121, %v281
    %v346 = vmul.f32 %v122, %v281
    %v347 = vadd.f32 %v283, %v287
    %v348 = vadd.f32 %v347, %v291
    %v349 = vadd.f32 %v348, %v295
    %v350 = vadd.f32 %v349, %v299
    %v351 = vadd.f32 %v350, %v303
    %v352 = vadd.f32 %v351, %v307
    %v353 = vadd.f32 %v352, %v311
    %v354 = vadd.f32 %v353, %v315
    %v355 = vadd.f32 %v354, %v319
    %v356 = vadd.f32 %v355, %v323
    %v357 = vadd.f32 %v356, %v327
    %v358 = vadd.f32 %v357, %v331
    %v359 = vadd.f32 %v358, %v335
    %v360 = vadd.f32 %v359, %v339
    %v361 = vadd.f32 %v360, %v343
    %v362 = vrot.slane %v361, 4
    %v363 = vadd.f32 %v361, %v362
    %v364 = vrot.slane %v363, 2
    %v365 = vadd.f32 %v363, %v364
    %v366 = vrot.slane %v365, 1
    %v367 = vadd.f32 %v365, %v366
    %v368 = vadd.f32 %v284, %v288
    %v369 = vadd.f32 %v368, %v292
    %v370 = vadd.f32 %v369, %v296
    %v371 = vadd.f32 %v370, %v300
    %v372 = vadd.f32 %v371, %v304
    %v373 = vadd.f32 %v372, %v308
    %v374 = vadd.f32 %v373, %v312
    %v375 = vadd.f32 %v374, %v316
    %v376 = vadd.f32 %v375, %v320
    %v377 = vadd.f32 %v376, %v324
    %v378 = vadd.f32 %v377, %v328
    %v379 = vadd.f32 %v378, %v332
    %v380 = vadd.f32 %v379, %v336
    %v381 = vadd.f32 %v380, %v340
    %v382 = vadd.f32 %v381, %v344
    %v383 = vrot.slane %v382, 4
    %v384 = vadd.f32 %v382, %v383
    %v385 = vrot.slane %v384, 2
    %v386 = vadd.f32 %v384, %v385
    %v387 = vrot.slane %v386, 1
    %v388 = vadd.f32 %v386, %v387
    %v389 = vadd.f32 %v285, %v289
    %v390 = vadd.f32 %v389, %v293
    %v391 = vadd.f32 %v390, %v297
    %v392 = vadd.f32 %v391, %v301
    %v393 = vadd.f32 %v392, %v305
    %v394 = vadd.f32 %v393, %v309
    %v395 = vadd.f32 %v394, %v313
    %v396 = vadd.f32 %v395, %v317
    %v397 = vadd.f32 %v396, %v321
    %v398 = vadd.f32 %v397, %v325
    %v399 = vadd.f32 %v398, %v329
    %v400 = vadd.f32 %v399, %v333
    %v401 = vadd.f32 %v400, %v337
    %v402 = vadd.f32 %v401, %v341
    %v403 = vadd.f32 %v402, %v345
    %v404 = vrot.slane %v403, 4
    %v405 = vadd.f32 %v403, %v404
    %v406 = vrot.slane %v405, 2
    %v407 = vadd.f32 %v405, %v406
    %v408 = vrot.slane %v407, 1
    %v409 = vadd.f32 %v407, %v408
    %v410 = vadd.f32 %v286, %v290
    %v411 = vadd.f32 %v410, %v294
    %v412 = vadd.f32 %v411, %v298
    %v413 = vadd.f32 %v412, %v302
    %v414 = vadd.f32 %v413, %v306
    %v415 = vadd.f32 %v414, %v310
    %v416 = vadd.f32 %v415, %v314
    %v417 = vadd.f32 %v416, %v318
    %v418 = vadd.f32 %v417, %v322
    %v419 = vadd.f32 %v418, %v326
    %v420 = vadd.f32 %v419, %v330
    %v421 = vadd.f32 %v420, %v334
    %v422 = vadd.f32 %v421, %v338
    %v423 = vadd.f32 %v422, %v342
    %v424 = vadd.f32 %v423, %v346
    %v425 = vrot.slane %v424, 4
    %v426 = vadd.f32 %v424, %v425
    %v427 = vrot.slane %v426, 2
    %v428 = vadd.f32 %v426, %v427
    %v429 = vrot.slane %v428, 1
    %v430 = vadd.f32 %v428, %v429
    %s431 = sld [smem:[#allocation8]]
    %v432 = vstv %s431
    %v433 = vadd.f32 %v367, %v432
    %v434 = vadd.f32 %v388, %v432
    %v435 = vadd.f32 %v409, %v432
    %v436 = vadd.f32 %v430, %v432
    %437 = vset.pattern.permute.xlu0 1
    %438 = vperm.xlu0 %437, %v187
    %v439 = vpop.permute.xlu0 %438
    %441 = vset.pattern.permute.xlu0 1
    %442 = vperm.xlu0 %441, %v188
    %v443 = vpop.permute.xlu0 %442
    %445 = vset.pattern.permute.xlu0 1
    %446 = vperm.xlu0 %445, %v189
    %v447 = vpop.permute.xlu0 %446
    %449 = vset.pattern.permute.xlu0 1
    %450 = vperm.xlu0 %449, %v190
    %v451 = vpop.permute.xlu0 %450
    %453 = vset.pattern.permute.xlu0 1
    %454 = vperm.xlu0 %453, %v191
    %v455 = vpop.permute.xlu0 %454
    %457 = vset.pattern.permute.xlu0 1
    %458 = vperm.xlu0 %457, %v192
    %v459 = vpop.permute.xlu0 %458
    %461 = vset.pattern.permute.xlu0 1
    %462 = vperm.xlu0 %461, %v193
    %v463 = vpop.permute.xlu0 %462
    %465 = vset.pattern.permute.xlu0 1
    %466 = vperm.xlu0 %465, %v194
    %v467 = vpop.permute.xlu0 %466
    %469 = vset.pattern.permute.xlu0 1
    %470 = vperm.xlu0 %469, %v195
    %v471 = vpop.permute.xlu0 %470
    %473 = vset.pattern.permute.xlu0 1
    %474 = vperm.xlu0 %473, %v196
    %v475 = vpop.permute.xlu0 %474
    %477 = vset.pattern.permute.xlu0 1
    %478 = vperm.xlu0 %477, %v197
    %v479 = vpop.permute.xlu0 %478
    %481 = vset.pattern.permute.xlu0 1
    %482 = vperm.xlu0 %481, %v198
    %v483 = vpop.permute.xlu0 %482
    %485 = vset.pattern.permute.xlu0 1
    %486 = vperm.xlu0 %485, %v199
    %v487 = vpop.permute.xlu0 %486
    %489 = vset.pattern.permute.xlu0 1
    %490 = vperm.xlu0 %489, %v200
    %v491 = vpop.permute.xlu0 %490
    %493 = vset.pattern.permute.xlu0 1
    %494 = vperm.xlu0 %493, %v201
    %v495 = vpop.permute.xlu0 %494
    %497 = vset.pattern.permute.xlu0 1
    %498 = vperm.xlu0 %497, %v202
    %v499 = vpop.permute.xlu0 %498
    %v501 = vmul.f32 %v123, %v439
    %v502 = vmul.f32 %v124, %v439
    %v503 = vmul.f32 %v125, %v439
    %v504 = vmul.f32 %v126, %v439
    %v505 = vmul.f32 %v127, %v443
    %v506 = vmul.f32 %v128, %v443
    %v507 = vmul.f32 %v129, %v443
    %v508 = vmul.f32 %v130, %v443
    %v509 = vmul.f32 %v131, %v447
    %v510 = vmul.f32 %v132, %v447
    %v511 = vmul.f32 %v133, %v447
    %v512 = vmul.f32 %v134, %v447
    %v513 = vmul.f32 %v135, %v451
    %v514 = vmul.f32 %v136, %v451
    %v515 = vmul.f32 %v137, %v451
    %v516 = vmul.f32 %v138, %v451
    %v517 = vmul.f32 %v139, %v455
    %v518 = vmul.f32 %v140, %v455
    %v519 = vmul.f32 %v141, %v455
    %v520 = vmul.f32 %v142, %v455
    %v521 = vmul.f32 %v143, %v459
    %v522 = vmul.f32 %v144, %v459
    %v523 = vmul.f32 %v145, %v459
    %v524 = vmul.f32 %v146, %v459
    %v525 = vmul.f32 %v147, %v463
    %v526 = vmul.f32 %v148, %v463
    %v527 = vmul.f32 %v149, %v463
    %v528 = vmul.f32 %v150, %v463
    %v529 = vmul.f32 %v151, %v467
    %v530 = vmul.f32 %v152, %v467
    %v531 = vmul.f32 %v153, %v467
    %v532 = vmul.f32 %v154, %v467
    %v533 = vmul.f32 %v155, %v471
    %v534 = vmul.f32 %v156, %v471
    %v535 = vmul.f32 %v157, %v471
    %v536 = vmul.f32 %v158, %v471
    %v537 = vmul.f32 %v159, %v475
    %v538 = vmul.f32 %v160, %v475
    %v539 = vmul.f32 %v161, %v475
    %v540 = vmul.f32 %v162, %v475
    %v541 = vmul.f32 %v163, %v479
    %v542 = vmul.f32 %v164, %v479
    %v543 = vmul.f32 %v165, %v479
    %v544 = vmul.f32 %v166, %v479
    %v545 = vmul.f32 %v167, %v483
    %v546 = vmul.f32 %v168, %v483
    %v547 = vmul.f32 %v169, %v483
    %v548 = vmul.f32 %v170, %v483
    %v549 = vmul.f32 %v171, %v487
    %v550 = vmul.f32 %v172, %v487
    %v551 = vmul.f32 %v173, %v487
    %v552 = vmul.f32 %v174, %v487
    %v553 = vmul.f32 %v175, %v491
    %v554 = vmul.f32 %v176, %v491
    %v555 = vmul.f32 %v177, %v491
    %v556 = vmul.f32 %v178, %v491
    %v557 = vmul.f32 %v179, %v495
    %v558 = vmul.f32 %v180, %v495
    %v559 = vmul.f32 %v181, %v495
    %v560 = vmul.f32 %v182, %v495
    %v561 = vmul.f32 %v183, %v499
    %v562 = vmul.f32 %v184, %v499
    %v563 = vmul.f32 %v185, %v499
    %v564 = vmul.f32 %v186, %v499
    %v565 = vadd.f32 %v501, %v505
    %v566 = vadd.f32 %v565, %v509
    %v567 = vadd.f32 %v566, %v513
    %v568 = vadd.f32 %v567, %v517
    %v569 = vadd.f32 %v568, %v521
    %v570 = vadd.f32 %v569, %v525
    %v571 = vadd.f32 %v570, %v529
    %v572 = vadd.f32 %v571, %v533
    %v573 = vadd.f32 %v572, %v537
    %v574 = vadd.f32 %v573, %v541
    %v575 = vadd.f32 %v574, %v545
    %v576 = vadd.f32 %v575, %v549
    %v577 = vadd.f32 %v576, %v553
    %v578 = vadd.f32 %v577, %v557
    %v579 = vadd.f32 %v578, %v561
    %v580 = vrot.slane %v579, 4
    %v581 = vadd.f32 %v579, %v580
    %v582 = vrot.slane %v581, 2
    %v583 = vadd.f32 %v581, %v582
    %v584 = vrot.slane %v583, 1
    %v585 = vadd.f32 %v583, %v584
    %v586 = vadd.f32 %v502, %v506
    %v587 = vadd.f32 %v586, %v510
    %v588 = vadd.f32 %v587, %v514
    %v589 = vadd.f32 %v588, %v518
    %v590 = vadd.f32 %v589, %v522
    %v591 = vadd.f32 %v590, %v526
    %v592 = vadd.f32 %v591, %v530
    %v593 = vadd.f32 %v592, %v534
    %v594 = vadd.f32 %v593, %v538
    %v595 = vadd.f32 %v594, %v542
    %v596 = vadd.f32 %v595, %v546
    %v597 = vadd.f32 %v596, %v550
    %v598 = vadd.f32 %v597, %v554
    %v599 = vadd.f32 %v598, %v558
    %v600 = vadd.f32 %v599, %v562
    %v601 = vrot.slane %v600, 4
    %v602 = vadd.f32 %v600, %v601
    %v603 = vrot.slane %v602, 2
    %v604 = vadd.f32 %v602, %v603
    %v605 = vrot.slane %v604, 1
    %v606 = vadd.f32 %v604, %v605
    %v607 = vadd.f32 %v503, %v507
    %v608 = vadd.f32 %v607, %v511
    %v609 = vadd.f32 %v608, %v515
    %v610 = vadd.f32 %v609, %v519
    %v611 = vadd.f32 %v610, %v523
    %v612 = vadd.f32 %v611, %v527
    %v613 = vadd.f32 %v612, %v531
    %v614 = vadd.f32 %v613, %v535
    %v615 = vadd.f32 %v614, %v539
    %v616 = vadd.f32 %v615, %v543
    %v617 = vadd.f32 %v616, %v547
    %v618 = vadd.f32 %v617, %v551
    %v619 = vadd.f32 %v618, %v555
    %v620 = vadd.f32 %v619, %v559
    %v621 = vadd.f32 %v620, %v563
    %v622 = vrot.slane %v621, 4
    %v623 = vadd.f32 %v621, %v622
    %v624 = vrot.slane %v623, 2
    %v625 = vadd.f32 %v623, %v624
    %v626 = vrot.slane %v625, 1
    %v627 = vadd.f32 %v625, %v626
    %v628 = vadd.f32 %v504, %v508
    %v629 = vadd.f32 %v628, %v512
    %v630 = vadd.f32 %v629, %v516
    %v631 = vadd.f32 %v630, %v520
    %v632 = vadd.f32 %v631, %v524
    %v633 = vadd.f32 %v632, %v528
    %v634 = vadd.f32 %v633, %v532
    %v635 = vadd.f32 %v634, %v536
    %v636 = vadd.f32 %v635, %v540
    %v637 = vadd.f32 %v636, %v544
    %v638 = vadd.f32 %v637, %v548
    %v639 = vadd.f32 %v638, %v552
    %v640 = vadd.f32 %v639, %v556
    %v641 = vadd.f32 %v640, %v560
    %v642 = vadd.f32 %v641, %v564
    %v643 = vrot.slane %v642, 4
    %v644 = vadd.f32 %v642, %v643
    %v645 = vrot.slane %v644, 2
    %v646 = vadd.f32 %v644, %v645
    %v647 = vrot.slane %v646, 1
    %v648 = vadd.f32 %v646, %v647
    %s649 = sld [smem:[#allocation8 + $0x1]]
    %v650 = vstv %s649
    %v651 = vadd.f32 %v585, %v650
    %v652 = vadd.f32 %v606, %v650
    %v653 = vadd.f32 %v627, %v650
    %v654 = vadd.f32 %v648, %v650
    %v655 = vxor.u32 %v433, 2147483648
    %v656 = vxor.u32 %v434, 2147483648
    %v657 = vxor.u32 %v435, 2147483648
    %v658 = vxor.u32 %v436, 2147483648
    %v659 = vmul.f32 %v655, 1.442695
    %v660 = vpow.pop %v659
    %v661 = vmul.f32 %v656, 1.442695
    %v662 = vpow.pop %v661
    %v663 = vmul.f32 %v657, 1.442695
    %v664 = vpow.pop %v663
    %v665 = vmul.f32 %v658, 1.442695
    %v666 = vpow.pop %v665
    %v667 = vadd.f32 %v660, 1.0
    %v668 = vadd.f32 %v662, 1.0
    %v669 = vadd.f32 %v664, 1.0
    %v670 = vadd.f32 %v666, 1.0
    %v671 = vrcp.pop %v667
    %v672 = vmul.f32 1.0, %v671
    %v673 = vrcp.pop %v668
    %v674 = vmul.f32 1.0, %v673
    %v675 = vrcp.pop %v669
    %v676 = vmul.f32 1.0, %v675
    %v677 = vrcp.pop %v670
    %v678 = vmul.f32 1.0, %v677
    %v679 = vxor.u32 %v651, 2147483648
    %v680 = vxor.u32 %v652, 2147483648
    %v681 = vxor.u32 %v653, 2147483648
    %v682 = vxor.u32 %v654, 2147483648
    %v683 = vmul.f32 %v679, 1.442695
    %v684 = vpow.pop %v683
    %v685 = vmul.f32 %v680, 1.442695
    %v686 = vpow.pop %v685
    %v687 = vmul.f32 %v681, 1.442695
    %v688 = vpow.pop %v687
    %v689 = vmul.f32 %v682, 1.442695
    %v690 = vpow.pop %v689
    %v691 = vadd.f32 %v684, 1.0
    %v692 = vadd.f32 %v686, 1.0
    %v693 = vadd.f32 %v688, 1.0
    %v694 = vadd.f32 %v690, 1.0
    %v695 = vrcp.pop %v691
    %v696 = vmul.f32 1.0, %v695
    %v697 = vrcp.pop %v692
    %v698 = vmul.f32 1.0, %v697
    %v699 = vrcp.pop %v693
    %v700 = vmul.f32 1.0, %v699
    %v701 = vrcp.pop %v694
    %v702 = vmul.f32 1.0, %v701
    %v707 = vcombine.low %v672, %v674
    %v708 = vcombine.low %v676, %v678
    %v710 = vunpack.c.l.s4 1966171168
    %v711 = vunpack.c.0.s8 %v710
    %v712 = vlaneseq
    %v713 = vshrl.u32 %v712, 7
    %v714 = vsub.s32 %v711, %v713
    %v715 = vrot.slane %v707, %v714
    %v717 = vunpack.c.l.s4 1966171168
    %v718 = vunpack.c.0.s8 %v717
    %v719 = vlaneseq
    %v720 = vshrl.u32 %v719, 7
    %v721 = vsub.s32 %v718, %v720
    %v722 = vrot.slane %v708, %v721
    %v723 = vcombine.low %v715, %v722
    %v725 = vunpack.c.l.s4 1966171168
    %v726 = vunpack.c.0.s8 %v725
    %v727 = vlaneseq
    %v728 = vshrl.u32 %v727, 7
    %v729 = vsub.s32 %v726, %v728
    %v730 = vrot.slane %v723, %v729
    %v732 = vlaneseq
    %vm733 = vcmp.ge.s32.totalorder %v732, 0
    %vm734 = vcmp.lt.s32.totalorder %v732, 512
    %vm735 = vmand %vm733, %vm734
    %736 = vst.msk [vmem:[#allocation9] ss:$2 sm:$0xf] %vm735, %v730
    %v741 = vcombine.low %v696, %v698
    %v742 = vcombine.low %v700, %v702
    %v744 = vunpack.c.l.s4 1966171168
    %v745 = vunpack.c.0.s8 %v744
    %v746 = vlaneseq
    %v747 = vshrl.u32 %v746, 7
    %v748 = vsub.s32 %v745, %v747
    %v749 = vrot.slane %v741, %v748
    %v751 = vunpack.c.l.s4 1966171168
    %v752 = vunpack.c.0.s8 %v751
    %v753 = vlaneseq
    %v754 = vshrl.u32 %v753, 7
    %v755 = vsub.s32 %v752, %v754
    %v756 = vrot.slane %v742, %v755
    %v757 = vcombine.low %v749, %v756
    %v759 = vunpack.c.l.s4 1966171168
    %v760 = vunpack.c.0.s8 %v759
    %v761 = vlaneseq
    %v762 = vshrl.u32 %v761, 7
    %v763 = vsub.s32 %v760, %v762
    %v764 = vrot.slane %v757, %v763
    %s766 = scalar_lea.vmem [#allocation9], 1
    %767 = vst.msk [vmem:[%s766] ss:$2 sm:$0xf] %vm735, %v764
    // Predicated region
    $region30: #{tpu_custom_call.1} parent=1 // pred_check
      _
    $region31: #{tpu_custom_call.1} parent=1 // pred_check_branch
      %769 = sbr.rel (0) target = $region33
    $region32: #{tpu_custom_call.1} parent=1 // pred_region
      %s771 = ssub.s32 128, 128
      %772 = vsyncadd [#allocation4], %s771
      %s774 = sshll.u32 [#allocation9], 4
      %s775 = int_to_ptr.vmem [resolvable:$true] %s774
      %777 = dma.vmem_to_hbm [thread:$0]  %s775, 128, %s4, [#allocation4]
    $region33: #{tpu_custom_call.1} parent=1 // pred_fallthru
      _
    // Predicated region
    $region34: #{tpu_custom_call.1} parent=1 // pred_check
      _
    $region35: #{tpu_custom_call.1} parent=1 // pred_check_branch
      %779 = sbr.rel (0) target = $region37
    $region36: #{tpu_custom_call.1} parent=1 // pred_region
      %780 = dma.done [#allocation4], 128
    $region37: #{tpu_custom_call.1} parent=1 // pred_fallthru
      _
    %781 = vsyncpa [#allocation3], 1
    %782 = vsyncpa [#allocation7], 1
    %783 = vsyncpa [#allocation4], 1
    %784 = vsyncpa [#allocation5], 1

</llo_original>
